<compile_context>
chip_gen: v6e
topology: v6e:2x2x1
jax: 0.10.0
libtpu: 0.0.40
codegen_flags: <defaults>
</compile_context>

<pallas_src>
import functools

import jax
import jax.numpy as jnp
from jax.experimental import pallas as pl
from jax.experimental.pallas import tpu as pltpu

_VMEM_BUDGET = 32 * 1024 * 1024   # per-block footprint cap (safe on v7x's 64 MiB physical VMEM)
_MIN_DMA_BYTES = 1 << 20          # keep each input DMA >= ~1 MiB (per-step overhead < ~5%)
_MIN_GRID_STEPS = 8               # >= 3-4 steps per TensorCore on v7x megacore


def _round_up(v: int, m: int) -> int:
    return -(-v // m) * m


def _vmem_per_unit(C: int, itemsize: int, lane_width: int) -> int:
    """VMEM bytes per spatial unit of one block: double-buffered input + output
    in the native dtype, plus ~2 full-block f32 temporaries (x.astype(f32) and
    one fused intermediate)."""
    return C * lane_width * (4 * itemsize + 2 * 4)


def _vmem_limit(block_vmem_bytes: int) -> int:
    """Explicit scoped-VMEM request: computed need + headroom (wb tile, compiler
    internal scratch), floored at 32 MiB and capped at 48 MiB (fits v7x)."""
    return int(min(48 << 20, max(32 << 20, block_vmem_bytes + (4 << 20))))


def _layernorm2d_kernel(x_ref, wb_ref, o_ref, *, eps: float, inv_c: float):
    """x/o block: (1, C, S_TILE, 128) [4-D path] or (1, C, HW_TILE) [3-D path];
    wb block: (2, C, 1, 1) or (2, C, 1).  The channel reduction (axis 1) is
    fully local to each block, so there is no accumulator and no carried state."""
    x = x_ref[...].astype(jnp.float32)
    mean = jnp.sum(x, axis=1, keepdims=True) * inv_c
    xc = x - mean
    # Two-pass, biased variance -- matches torch's (x-u).pow(2).mean(1).
    var = jnp.sum(xc * xc, axis=1, keepdims=True) * inv_c
    inv_std = jax.lax.rsqrt(var + eps)                 # EUP rsqrt: free slot
    w = wb_ref[0].astype(jnp.float32)                  # (C, 1[, 1]) broadcast
    b = wb_ref[1].astype(jnp.float32)
    o_ref[...] = (xc * inv_std * w + b).astype(o_ref.dtype)


def _pick_s_tile(B: int, C: int, S: int, itemsize: int) -> int:
    """Tile along S = HW // 128 (the block sublane axis) for the 4-D path."""
    per_s = _vmem_per_unit(C, itemsize, 128)
    max_s = max(8, ((_VMEM_BUDGET // per_s) // 8) * 8)
    s_tile = min(S, max_s)
    if s_tile < S:                         # block sublane dim: multiple of 8 or full extent
        s_tile = max(8, (s_tile // 8) * 8)

    # Prefer >= _MIN_GRID_STEPS total grid steps (megacore sharding + pipeline
    # overlap), but never shrink below one (8,128) tile or the ~1 MiB DMA floor.
    if S > 8 and B * pl.cdiv(S, s_tile) < _MIN_GRID_STEPS:
        floor_s = _round_up(max(1, _MIN_DMA_BYTES // (C * 128 * itemsize)), 8)
        per_batch = pl.cdiv(_MIN_GRID_STEPS, B)
        target = max(8, (pl.cdiv(S, per_batch) // 8) * 8, min(floor_s, s_tile))
        if target < s_tile:
            s_tile = target

    return S if s_tile >= S else s_tile


def _pick_hw_tile(C: int, HW: int, itemsize: int) -> int:
    """Lane tile for the 3-D fallback path (HW not a multiple of 128)."""
    if HW <= 128:
        return HW
    per_lane = _vmem_per_unit(C, itemsize, 1)
    max_lanes = max(128, ((_VMEM_BUDGET // per_lane) // 128) * 128)
    # Prefer the full extent (no ragged trailing block -> no masked vst.msk)
    # whenever it fits the VMEM budget; otherwise fall back to a 128-multiple tile.
    return HW if HW <= max_lanes else max_lanes


def layernorm2d(x: jax.Array, weight: jax.Array, bias: jax.Array,
                eps: float = 1e-6) -> jax.Array:
    """x: (B, C, H, W) NCHW; weight/bias: (C,). Returns (B, C, H, W)."""
    B, C, H, W = x.shape
    assert weight.shape == (C,) and bias.shape == (C,)
    HW = H * W
    itemsize = jnp.dtype(x.dtype).itemsize
    kernel = functools.partial(_layernorm2d_kernel, eps=float(eps), inv_c=1.0 / C)

    # weight & bias fused into one array: single DMA, constant across the grid.
    wb = jnp.stack([weight, bias], axis=0)                       # (2, C)

    if HW % 128 == 0:
        # ---- 4-D path: C as a leading dim, spatial = (S, 128) lane-dense slab.
        S = HW // 128
        s_tile = _pick_s_tile(B, C, S, itemsize)
        grid = (B, pl.cdiv(S, s_tile))
        x4 = x.reshape(B, C, S, 128)                             # free metadata reshape (NCHW)
        wb4 = wb.reshape(2, C, 1, 1)
        block_vmem = s_tile * _vmem_per_unit(C, itemsize, 128)

        out = pl.pallas_call(
            kernel,
            out_shape=jax.ShapeDtypeStruct((B, C, S, 128), x.dtype),
            grid_spec=pltpu.PrefetchScalarGridSpec(
                num_scalar_prefetch=0,
                grid=grid,
                in_specs=[
                    pl.BlockSpec((1, C, s_tile, 128), lambda b, s: (b, 0, s, 0)),
                    pl.BlockSpec((2, C, 1, 1), lambda b, s: (0, 0, 0, 0)),
                ],
                out_specs=pl.BlockSpec((1, C, s_tile, 128), lambda b, s: (b, 0, s, 0)),
            ),
            compiler_params=pltpu.CompilerParams(
                dimension_semantics=("parallel", "parallel"),
                vmem_limit_bytes=_vmem_limit(block_vmem),
            ),
        )(x4, wb4)
        return out.reshape(B, C, H, W)

    # ---- 3-D fallback path: channels on sublanes, full-extent spatial tile preferred.
    tile = _pick_hw_tile(C, HW, itemsize)
    grid = (B, pl.cdiv(HW, tile))
    x3 = x.reshape(B, C, HW)
    wb3 = wb.reshape(2, C, 1)
    block_vmem = tile * _vmem_per_unit(C, itemsize, 1)

    out = pl.pallas_call(
        kernel,
        out_shape=jax.ShapeDtypeStruct((B, C, HW), x.dtype),
        grid_spec=pltpu.PrefetchScalarGridSpec(
            num_scalar_prefetch=0,
            grid=grid,
            in_specs=[
                pl.BlockSpec((1, C, tile), lambda b, s: (b, 0, s)),
                pl.BlockSpec((2, C, 1), lambda b, s: (0, 0, 0)),
            ],
            out_specs=pl.BlockSpec((1, C, tile), lambda b, s: (b, 0, s)),
        ),
        compiler_params=pltpu.CompilerParams(
            dimension_semantics=("parallel", "parallel"),
            vmem_limit_bytes=_vmem_limit(block_vmem),
        ),
    )(x3, wb3)
    return out.reshape(B, C, H, W)


def layernorm2d_ref(x, weight, bias, eps=1e-6):
    u = jnp.mean(x, axis=1, keepdims=True)
    s = jnp.mean((x - u) ** 2, axis=1, keepdims=True)
    xn = (x - u) / jnp.sqrt(s + eps)
    return weight[None, :, None, None] * xn + bias[None, :, None, None]


if __name__ == "__main__":
    B, C, H, W = 2, 4, 16, 16
    key = jax.random.PRNGKey(0)
    kx, kw, kb = jax.random.split(key, 3)
    x = jax.random.normal(kx, (B, C, H, W), dtype=jnp.float32)
    # Non-trivial affine params (default nn init is ones/zeros; same math).
    weight = 1.0 + 0.1 * jax.random.normal(kw, (C,), dtype=jnp.float32)
    bias = 0.1 * jax.random.normal(kb, (C,), dtype=jnp.float32)

    out = jax.block_until_ready(layernorm2d(x, weight, bias))
    ref = layernorm2d_ref(x, weight, bias)
    assert out.shape == (B, C, H, W)
    assert jnp.allclose(out, ref, atol=1e-5, rtol=1e-5)

    # Also exercise the 3-D fallback path (HW not a multiple of 128).
    x2 = jax.random.normal(kx, (1, 8, 14, 14), dtype=jnp.float32)
    w2 = 1.0 + 0.05 * jax.random.normal(kw, (8,), dtype=jnp.float32)
    b2 = 0.05 * jax.random.normal(kb, (8,), dtype=jnp.float32)
    out2 = jax.block_until_ready(layernorm2d(x2, w2, b2))
    assert jnp.allclose(out2, layernorm2d_ref(x2, w2, b2), atol=1e-5, rtol=1e-5)

    print("KERNEL_OK")
</pallas_src>

<mosaic_0001>
module attributes {stable_mosaic.version = 11 : i64} {
  func.func @_layernorm2d_kernel(%arg0: i32, %arg1: i32, %arg2: memref<1x4x2x128xf32, #tpu.memory_space<vmem>>, %arg3: memref<2x4x1x1xf32, #tpu.memory_space<vmem>>, %arg4: memref<1x4x2x128xf32, #tpu.memory_space<vmem>>) attributes {dimension_semantics = [#tpu.dimension_semantics<parallel>, #tpu.dimension_semantics<parallel>], iteration_bounds = array<i64: 2, 1>, scalar_prefetch = 0 : i64, scratch_operands = 0 : i64, tpu.core_type = #tpu.core_type<tc>, window_params = [{transform_indices = @transform_0, window_bounds = array<i64: 1, 4, 2, 128>}, {pipeline_mode = #tpu.pipeline_mode<synchronous>, transform_indices = @transform_1, window_bounds = array<i64: 2, 4, 1, 1>}, {transform_indices = @transform_2, window_bounds = array<i64: 1, 4, 2, 128>}]} {
    %c0 = arith.constant 0 : index
    %c0_0 = arith.constant 0 : index
    %c0_1 = arith.constant 0 : index
    %c0_2 = arith.constant 0 : index
    %0 = vector.load %arg2[%c0, %c0_0, %c0_1, %c0_2] : memref<1x4x2x128xf32, #tpu.memory_space<vmem>>, vector<1x4x2x128xf32>
    %cst = arith.constant dense<0.000000e+00> : vector<1x2x128xf32>
    %1 = vector.multi_reduction <add>, %0, %cst [1] : vector<1x4x2x128xf32> to vector<1x2x128xf32>
    %2 = vector.shape_cast %1 : vector<1x2x128xf32> to vector<1x1x2x128xf32>
    %cst_3 = arith.constant 2.500000e-01 : f32
    %3 = vector.broadcast %cst_3 : f32 to vector<1x1x2x128xf32>
    %4 = arith.mulf %2, %3 : vector<1x1x2x128xf32>
    %5 = vector.broadcast %4 : vector<1x1x2x128xf32> to vector<1x4x2x128xf32>
    %6 = arith.subf %0, %5 : vector<1x4x2x128xf32>
    %7 = arith.mulf %6, %6 : vector<1x4x2x128xf32>
    %cst_4 = arith.constant dense<0.000000e+00> : vector<1x2x128xf32>
    %8 = vector.multi_reduction <add>, %7, %cst_4 [1] : vector<1x4x2x128xf32> to vector<1x2x128xf32>
    %9 = vector.shape_cast %8 : vector<1x2x128xf32> to vector<1x1x2x128xf32>
    %cst_5 = arith.constant 2.500000e-01 : f32
    %10 = vector.broadcast %cst_5 : f32 to vector<1x1x2x128xf32>
    %11 = arith.mulf %9, %10 : vector<1x1x2x128xf32>
    %cst_6 = arith.constant 9.99999997E-7 : f32
    %12 = vector.broadcast %cst_6 : f32 to vector<1x1x2x128xf32>
    %13 = arith.addf %11, %12 : vector<1x1x2x128xf32>
    %14 = math.rsqrt %13 : vector<1x1x2x128xf32>
    %c0_7 = arith.constant 0 : index
    %c0_8 = arith.constant 0 : index
    %c0_9 = arith.constant 0 : index
    %c0_10 = arith.constant 0 : index
    %15 = vector.load %arg3[%c0_7, %c0_8, %c0_9, %c0_10] : memref<2x4x1x1xf32, #tpu.memory_space<vmem>>, vector<1x4x1x1xf32>
    %16 = vector.shape_cast %15 : vector<1x4x1x1xf32> to vector<4x1x1xf32>
    %c1 = arith.constant 1 : index
    %c0_11 = arith.constant 0 : index
    %c0_12 = arith.constant 0 : index
    %c0_13 = arith.constant 0 : index
    %17 = vector.load %arg3[%c1, %c0_11, %c0_12, %c0_13] : memref<2x4x1x1xf32, #tpu.memory_space<vmem>>, vector<1x4x1x1xf32>
    %18 = vector.shape_cast %17 : vector<1x4x1x1xf32> to vector<4x1x1xf32>
    %19 = vector.broadcast %14 : vector<1x1x2x128xf32> to vector<1x4x2x128xf32>
    %20 = arith.mulf %6, %19 : vector<1x4x2x128xf32>
    %21 = vector.shape_cast %16 : vector<4x1x1xf32> to vector<1x4x1x1xf32>
    %22 = vector.broadcast %21 : vector<1x4x1x1xf32> to vector<1x4x2x128xf32>
    %23 = arith.mulf %20, %22 : vector<1x4x2x128xf32>
    %24 = vector.shape_cast %18 : vector<4x1x1xf32> to vector<1x4x1x1xf32>
    %25 = vector.broadcast %24 : vector<1x4x1x1xf32> to vector<1x4x2x128xf32>
    %26 = arith.addf %23, %25 : vector<1x4x2x128xf32>
    %c0_14 = arith.constant 0 : index
    %c0_15 = arith.constant 0 : index
    %c0_16 = arith.constant 0 : index
    %c0_17 = arith.constant 0 : index
    %27 = vector.load %arg4[%c0_14, %c0_15, %c0_16, %c0_17] : memref<1x4x2x128xf32, #tpu.memory_space<vmem>>, vector<1x4x2x128xf32>
    tpu.vector_store %arg4[%c0_14, %c0_15, %c0_16, %c0_17], %26 {strides = array<i32>} : memref<1x4x2x128xf32, #tpu.memory_space<vmem>>, vector<1x4x2x128xf32>,
    return
  }
  func.func @transform_0(%arg0: i32, %arg1: i32) -> (i32, i32, i32, i32) {
    %c0_i32 = arith.constant 0 : i32
    %c0_i32_0 = arith.constant 0 : i32
    %c0_i32_1 = arith.constant 0 : i32
    return %arg0, %c0_i32, %arg1, %c0_i32_0 : i32, i32, i32, i32
  }
  func.func @transform_1(%arg0: i32, %arg1: i32) -> (i32, i32, i32, i32) {
    %c0_i32 = arith.constant 0 : i32
    %c0_i32_0 = arith.constant 0 : i32
    %c0_i32_1 = arith.constant 0 : i32
    %c0_i32_2 = arith.constant 0 : i32
    %c0_i32_3 = arith.constant 0 : i32
    return %c0_i32, %c0_i32_0, %c0_i32_1, %c0_i32_2 : i32, i32, i32, i32
  }
  func.func @transform_2(%arg0: i32, %arg1: i32) -> (i32, i32, i32, i32) {
    %c0_i32 = arith.constant 0 : i32
    %c0_i32_0 = arith.constant 0 : i32
    %c0_i32_1 = arith.constant 0 : i32
    return %arg0, %c0_i32, %arg1, %c0_i32_0 : i32, i32, i32, i32
  }
}

</mosaic_0001>

<llo_original>
// kernel: tpu_custom_call.1
$region0: #{tpu_custom_call.1}
  #allocation0 [shape = 'u32[]', space=smem, size = 0x4, offset = 0x4, fixed_abs, tag = 'smem constant byte address 0x4 - core index']
  #allocation1 [shape = 'u32[144,128]{1,0:T(1,128)}', space=vmem, size = 0x12000, scoped, tag = 'internal scratch']
  %s0 = inlined_call_operand.hbm [shape: f32[2,4,2,128], index: 0, kind: input, shape index: {}]
  %s1 = inlined_call_operand.vmem [shape: f32[2,4,1,1], index: 1, kind: input, shape index: {}]
  %s2 = inlined_call_operand.hbm [shape: f32[2,4,2,128], index: 2, kind: output, shape index: {}]
  %s3 = sld [smem:[#allocation0]]
  $region45: #{tpu_custom_call.1} parent=0
    _
  %s5 = ssub.s32 1, %s3
  %s6 = scalar_select 0, %s5, %s3
  $region1: #{tpu_custom_call.1} parent=0
    #allocation2 [shape = 'u8[8192]{0}', space=vmem, size = 0x2000, scoped, tag = 'input window, operand 0']
    #allocation3 [shape = 's32[2]{0}', space=sflag, size = 0x8, scoped, tag = 'scoped memory for tpu_custom_call.1']
    #allocation4 [shape = 's32[2]{0}', space=sflag, size = 0x8, scoped, tag = 'scoped memory for tpu_custom_call.1']
    #allocation5 [shape = 'u8[8192]{0}', space=vmem, size = 0x2000, scoped, tag = 'output window, operand 0']
    %7 = vsyncpa [#allocation3], 0
    %s8 = scalar_lea.sflag [#allocation3], 1
    %9 = vsyncpa %s8, 0
    %10 = vsyncpa [#allocation4], 0
    %s11 = scalar_lea.sflag [#allocation4], 1
    %12 = vsyncpa %s11, 0
    loop: start=0, step=1, limit=4
    $region2: #{tpu_custom_call.1} parent=1 // loop_pre_header
      _
    $region3: #{tpu_custom_call.1} parent=1 // loop_header
      %s14 = sphi 0, %s18
      %p15 = scmp.ge.s32.totalorder %s14, 4
      %s21 = sphi 0, %s33
      %s22 = sphi 0, %s29
      %s23 = sphi 0, %s21
      %s24 = sphi 0, %s22
      %s25 = sphi 0, %s23
      %s26 = sphi 0, %s24
      %s38 = sphi 0, %s40
      %s41 = sphi 0, %s38
      %s42 = sphi 0, %s41
      %s58 = sphi 0, %s42
      %s62 = sphi 0, %s62
      %s64 = sphi 0, %s62
      %s65 = sphi 0, %s64
      %s79 = sphi 0, %s65
      %s87 = sphi 0, %s89
      %s90 = sphi 0, %s87
      %s91 = sphi 0, %s90
      %s107 = sphi 0, %s91
    $region4: #{tpu_custom_call.1} parent=1 // loop_header_branch
      %17 = sbr.rel (%p15) target = $region8
    $region5: #{tpu_custom_call.1} parent=1 // loop_body
      %s19 = ssub.s32 %s14, 1
      %s20 = ssub.s32 %s14, 2
      %s27 = sadd.s32 1, %s22
      %p28 = scmp.ge.s32.totalorder %s27, 1
      %s29 = scalar_select %p28, 0, %s27
      %s30 = sadd.s32 1, %s21
      %s31 = scalar_select %p28, %s30, %s21
      %p32 = scmp.ge.s32.totalorder %s31, 2
      %s33 = scalar_select %p32, 0, %s31
      %s34 = ssub.s32 %s21, %s33
      %s35 = ssub.s32 %s22, %s29
      %s36 = sor.u32 %s34, %s35
      %p37 = scmp.eq.s32.totalorder %s36, 0
      %s39 = sadd.s32 %s38, 1
      %s40 = scalar_select %p37, %s38, %s39
      %p43 = pneg %p37
      %p44 = scmp.eq.s32.totalorder %s14, 1
      %p45 = por %p43, %p44
      %p46 = scmp.ne.s32.totalorder %s38, %s41
      %p47 = scmp.eq.s32.totalorder %s14, 0
      %p48 = por %p46, %p47
      %p49 = scmp.ne.s32.totalorder %s38, %s41
      %p50 = scmp.eq.s32.totalorder %s19, 1
      %p51 = por %p49, %p50
      %p52 = scmp.ne.s32.totalorder %s41, %s42
      %p53 = scmp.eq.s32.totalorder %s19, 0
      %p54 = por %p52, %p53
      %p55 = scmp.ne.s32.totalorder %s41, %s42
      %p56 = scmp.eq.s32.totalorder %s20, 1
      %p57 = por %p55, %p56
      %p59 = scmp.ne.s32.totalorder %s42, %s58
      %p60 = scmp.eq.s32.totalorder %s20, 0
      %p61 = por %p59, %p60
      %s63 = sadd.s32 %s62, 1
      %p66 = scmp.eq.s32.totalorder %s14, 1
      %p67 = scmp.ne.s32.totalorder %s62, %s64
      %p68 = scmp.eq.s32.totalorder %s14, 0
      %p69 = por %p67, %p68
      %p70 = scmp.ne.s32.totalorder %s62, %s64
      %p71 = scmp.eq.s32.totalorder %s19, 1
      %p72 = por %p70, %p71
      %p73 = scmp.ne.s32.totalorder %s64, %s65
      %p74 = scmp.eq.s32.totalorder %s19, 0
      %p75 = por %p73, %p74
      %p76 = scmp.ne.s32.totalorder %s64, %s65
      %p77 = scmp.eq.s32.totalorder %s20, 1
      %p78 = por %p76, %p77
      %p80 = scmp.ne.s32.totalorder %s65, %s79
      %p81 = scmp.eq.s32.totalorder %s20, 0
      %p82 = por %p80, %p81
      %s83 = ssub.s32 %s21, %s33
      %s84 = ssub.s32 %s22, %s29
      %s85 = sor.u32 %s83, %s84
      %p86 = scmp.eq.s32.totalorder %s85, 0
      %s88 = sadd.s32 %s87, 1
      %s89 = scalar_select %p86, %s87, %s88
      %p92 = pneg %p86
      %p93 = scmp.eq.s32.totalorder %s14, 1
      %p94 = por %p92, %p93
      %p95 = scmp.ne.s32.totalorder %s87, %s90
      %p96 = scmp.eq.s32.totalorder %s14, 0
      %p97 = por %p95, %p96
      %p98 = scmp.ne.s32.totalorder %s87, %s90
      %p99 = scmp.eq.s32.totalorder %s19, 1
      %p100 = por %p98, %p99
      %p101 = scmp.ne.s32.totalorder %s90, %s91
      %p102 = scmp.eq.s32.totalorder %s19, 0
      %p103 = por %p101, %p102
      %p104 = scmp.ne.s32.totalorder %s90, %s91
      %p105 = scmp.eq.s32.totalorder %s20, 1
      %p106 = por %p104, %p105
      %p108 = scmp.ne.s32.totalorder %s91, %s107
      %p109 = scmp.eq.s32.totalorder %s20, 0
      %p110 = por %p108, %p109
      %p111 = scmp.le.s32.totalorder 1, %s14
      %p112 = scmp.lt.s32.totalorder %s14, 3
      %p113 = pnand %p111, %p112
      %p114 = pneg %p113
      // Predicated region
      $region9: #{tpu_custom_call.1} parent=5 // pred_check
        _
      $region10: #{tpu_custom_call.1} parent=5 // pred_check_branch
        %116 = sbr.rel (%p113) target = $region12
      $region11: #{tpu_custom_call.1} parent=5 // pred_region
        %s117 = ssub.s32 %s14, 1
        // Predicated region
        $region13: #{tpu_custom_call.1} parent=11 // pred_check
          %p118 = pneg %p75
        $region14: #{tpu_custom_call.1} parent=11 // pred_check_branch
          %120 = sbr.rel (%p118) target = $region16
        $region15: #{tpu_custom_call.1} parent=11 // pred_region
          _
        $region16: #{tpu_custom_call.1} parent=11 // pred_fallthru
          _
      $region12: #{tpu_custom_call.1} parent=5 // pred_fallthru
        _
      %p121 = scmp.lt.s32.totalorder %s14, 2
      // Predicated region
      $region17: #{tpu_custom_call.1} parent=5 // pred_check
        %p122 = pneg %p121
      $region18: #{tpu_custom_call.1} parent=5 // pred_check_branch
        %124 = sbr.rel (%p122) target = $region20
      $region19: #{tpu_custom_call.1} parent=5 // pred_region
        // Predicated region
        $region21: #{tpu_custom_call.1} parent=19 // pred_check
          %p125 = pneg %p48
        $region22: #{tpu_custom_call.1} parent=19 // pred_check_branch
          %127 = sbr.rel (%p125) target = $region24
        $region23: #{tpu_custom_call.1} parent=19 // pred_region
          %s128 = sand.u32 %s38, 1
          %s129 = scalar_lea.sflag [#allocation3], %s128
          %s130 = sand.u32 %s38, 1
          %s131 = smul.addr %s130, 8
          %s132 = scalar_lea.vmem [#allocation2], %s131
          %s134 = ssub.s32 128, 128
          %135 = vsyncadd %s129, %s134
          %s136 = smul.addr %s21, 4
          %s137 = sadd.s32 %s22, %s136
          %s138 = smul.addr %s137, 32
          %s139 = scalar_lea.hbm %s0, %s138
          %s140 = sshll.u32 %s132, 4
          %s141 = int_to_ptr.vmem [resolvable:$true] %s140
          %146 = dma.hbm_to_vmem [thread:$0]  %s139, 128, %s141, %s129, 32, 32, 2
        $region24: #{tpu_custom_call.1} parent=19 // pred_fallthru
          _
      $region20: #{tpu_custom_call.1} parent=5 // pred_fallthru
        _
      %p147 = scmp.le.s32.totalorder 1, %s14
      %p148 = scmp.lt.s32.totalorder %s14, 3
      %p149 = pnand %p147, %p148
      %p150 = pneg %p149
      // Predicated region
      $region25: #{tpu_custom_call.1} parent=5 // pred_check
        _
      $region26: #{tpu_custom_call.1} parent=5 // pred_check_branch
        %152 = sbr.rel (%p149) target = $region28
      $region27: #{tpu_custom_call.1} parent=5 // pred_region
        %s153 = ssub.s32 %s14, 1
        %s154 = sand.u32 %s41, 1
        %s155 = scalar_lea.sflag [#allocation3], %s154
        %s156 = sand.u32 %s41, 1
        %s157 = smul.addr %s156, 8
        %s158 = scalar_lea.vmem [#allocation2], %s157
        // Predicated region
        $region29: #{tpu_custom_call.1} parent=27 // pred_check
          %p159 = pneg %p54
        $region30: #{tpu_custom_call.1} parent=27 // pred_check_branch
          %161 = sbr.rel (%p159) target = $region32
        $region31: #{tpu_custom_call.1} parent=27 // pred_region
          %162 = dma.done %s155, 128
        $region32: #{tpu_custom_call.1} parent=27 // pred_fallthru
          _
        %s163 = sand.u32 %s41, 1
        %s164 = scalar_lea.sflag [#allocation3], %s163
        %s165 = sand.u32 %s41, 1
        %s166 = smul.addr %s165, 8
        %s167 = scalar_lea.vmem [#allocation2], %s166
        %p168 = pneg %p54
        %p169 = pneg %p51
        %p170 = pneg %p75
        %p171 = pneg %p72
        %p172 = pneg %p103
        %p173 = pneg %p100
        %s174 = sand.u32 %s90, 1
        %s175 = scalar_lea.sflag [#allocation4], %s174
        %s176 = sand.u32 %s90, 1
        %s177 = smul.addr %s176, 8
        %s178 = scalar_lea.vmem [#allocation5], %s177
        %v179 = vld [vmem:[%s158] sm:$0x3]
        %v180 = vld [vmem:[%s158 + $0x2] sm:$0x3]
        %v181 = vld [vmem:[%s158 + $0x4] sm:$0x3]
        %v182 = vld [vmem:[%s158 + $0x6] sm:$0x3]
        %vm183 = vcmask 1041408
        %v184 = vsel %vm183, %v179, 0.0
        %v185 = vsel %vm183, %v180, 0.0
        %v186 = vadd.f32 %v184, %v185
        %v187 = vsel %vm183, %v181, 0.0
        %v188 = vadd.f32 %v186, %v187
        %v189 = vsel %vm183, %v182, 0.0
        %v190 = vadd.f32 %v188, %v189
        %v191 = vmul.f32 %v190, 0.25
        %v192 = vsub.f32 %v179, %v191
        %v193 = vsub.f32 %v180, %v191
        %v194 = vsub.f32 %v181, %v191
        %v195 = vsub.f32 %v182, %v191
        %v196 = vmul.f32 %v192, %v192
        %v197 = vmul.f32 %v193, %v193
        %v198 = vmul.f32 %v194, %v194
        %v199 = vmul.f32 %v195, %v195
        %v200 = vsel %vm183, %v196, 0.0
        %v201 = vsel %vm183, %v197, 0.0
        %v202 = vadd.f32 %v200, %v201
        %v203 = vsel %vm183, %v198, 0.0
        %v204 = vadd.f32 %v202, %v203
        %v205 = vsel %vm183, %v199, 0.0
        %v206 = vadd.f32 %v204, %v205
        %v207 = vmul.f32 %v206, 0.25
        %v208 = vadd.f32 %v207, 1e-06
        %v209 = vrsqrt.pop %v208
        %v210 = vld [vmem:[%s1] sm:$0x1]
        %v211 = vld [vmem:[%s1 + $0x1] sm:$0x1]
        %v212 = vld [vmem:[%s1 + $0x2] sm:$0x1]
        %v213 = vld [vmem:[%s1 + $0x3] sm:$0x1]
        %s214 = scalar_lea.vmem %s1, 4
        %v215 = vld [vmem:[%s214] sm:$0x1]
        %v216 = vld [vmem:[%s214 + $0x1] sm:$0x1]
        %v217 = vld [vmem:[%s214 + $0x2] sm:$0x1]
        %v218 = vld [vmem:[%s214 + $0x3] sm:$0x1]
        %v219 = vmul.f32 %v192, %v209
        %v220 = vmul.f32 %v193, %v209
        %v221 = vmul.f32 %v194, %v209
        %v222 = vmul.f32 %v195, %v209
        %v227 = vlaneseq
        %v228 = vshrl.u32 %v227, 7
        %v229 = vsub.s32 0, %v228
        %v230 = vrot.slane %v210, %v229
        %v231 = vlaneseq
        %v232 = vshrl.u32 %v231, 7
        %v233 = vsub.s32 0, %v232
        %v234 = vrot.slane %v211, %v233
        %v235 = vlaneseq
        %v236 = vshrl.u32 %v235, 7
        %v237 = vsub.s32 0, %v236
        %v238 = vrot.slane %v212, %v237
        %v239 = vlaneseq
        %v240 = vshrl.u32 %v239, 7
        %v241 = vsub.s32 0, %v240
        %v242 = vrot.slane %v213, %v241
        %243 = vset.pattern.permute.xlu0 0
        %244 = vperm.xlu0 %243, %v230
        %v245 = vpop.permute.xlu0 %244
        %247 = vset.pattern.permute.xlu0 0
        %248 = vperm.xlu0 %247, %v234
        %v249 = vpop.permute.xlu0 %248
        %251 = vset.pattern.permute.xlu0 0
        %252 = vperm.xlu0 %251, %v238
        %v253 = vpop.permute.xlu0 %252
        %255 = vset.pattern.permute.xlu0 0
        %256 = vperm.xlu0 %255, %v242
        %v257 = vpop.permute.xlu0 %256
        %v259 = vmul.f32 %v219, %v245
        %v260 = vmul.f32 %v220, %v249
        %v261 = vmul.f32 %v221, %v253
        %v262 = vmul.f32 %v222, %v257
        %v267 = vlaneseq
        %v268 = vshrl.u32 %v267, 7
        %v269 = vsub.s32 0, %v268
        %v270 = vrot.slane %v215, %v269
        %v271 = vlaneseq
        %v272 = vshrl.u32 %v271, 7
        %v273 = vsub.s32 0, %v272
        %v274 = vrot.slane %v216, %v273
        %v275 = vlaneseq
        %v276 = vshrl.u32 %v275, 7
        %v277 = vsub.s32 0, %v276
        %v278 = vrot.slane %v217, %v277
        %v279 = vlaneseq
        %v280 = vshrl.u32 %v279, 7
        %v281 = vsub.s32 0, %v280
        %v282 = vrot.slane %v218, %v281
        %283 = vset.pattern.permute.xlu0 0
        %284 = vperm.xlu0 %283, %v270
        %v285 = vpop.permute.xlu0 %284
        %287 = vset.pattern.permute.xlu0 0
        %288 = vperm.xlu0 %287, %v274
        %v289 = vpop.permute.xlu0 %288
        %291 = vset.pattern.permute.xlu0 0
        %292 = vperm.xlu0 %291, %v278
        %v293 = vpop.permute.xlu0 %292
        %295 = vset.pattern.permute.xlu0 0
        %296 = vperm.xlu0 %295, %v282
        %v297 = vpop.permute.xlu0 %296
        %v299 = vadd.f32 %v259, %v285
        %v300 = vadd.f32 %v260, %v289
        %v301 = vadd.f32 %v261, %v293
        %v302 = vadd.f32 %v262, %v297
        %303 = vst [vmem:[%s178] sm:$0x3] %v299
        %304 = vst [vmem:[%s178 + $0x2] sm:$0x3] %v300
        %305 = vst [vmem:[%s178 + $0x4] sm:$0x3] %v301
        %306 = vst [vmem:[%s178 + $0x6] sm:$0x3] %v302
        %s307 = sand.u32 %s90, 1
        %s308 = scalar_lea.sflag [#allocation4], %s307
        %s309 = sand.u32 %s90, 1
        %s310 = smul.addr %s309, 8
        %s311 = scalar_lea.vmem [#allocation5], %s310
        // Predicated region
        $region33: #{tpu_custom_call.1} parent=27 // pred_check
          %p312 = pneg %p100
        $region34: #{tpu_custom_call.1} parent=27 // pred_check_branch
          %314 = sbr.rel (%p312) target = $region36
        $region35: #{tpu_custom_call.1} parent=27 // pred_region
          %s316 = ssub.s32 128, 128
          %317 = vsyncadd %s308, %s316
          %s318 = smul.addr %s23, 4
          %s319 = sadd.s32 %s24, %s318
          %s320 = smul.addr %s319, 32
          %s321 = scalar_lea.hbm %s2, %s320
          %s322 = sshll.u32 %s311, 4
          %s323 = int_to_ptr.vmem [resolvable:$true] %s322
          %328 = dma.vmem_to_hbm [thread:$0]  %s323, 128, %s321, %s308, 32, 32, 2
        $region36: #{tpu_custom_call.1} parent=27 // pred_fallthru
          _
      $region28: #{tpu_custom_call.1} parent=5 // pred_fallthru
        _
      %p329 = scmp.le.s32.totalorder 2, %s14
      // Predicated region
      $region37: #{tpu_custom_call.1} parent=5 // pred_check
        %p330 = pneg %p329
      $region38: #{tpu_custom_call.1} parent=5 // pred_check_branch
        %332 = sbr.rel (%p330) target = $region40
      $region39: #{tpu_custom_call.1} parent=5 // pred_region
        %s333 = ssub.s32 %s14, 2
        // Predicated region
        $region41: #{tpu_custom_call.1} parent=39 // pred_check
          %p334 = pneg %p106
        $region42: #{tpu_custom_call.1} parent=39 // pred_check_branch
          %336 = sbr.rel (%p334) target = $region44
        $region43: #{tpu_custom_call.1} parent=39 // pred_region
          %s337 = sand.u32 %s91, 1
          %s338 = scalar_lea.sflag [#allocation4], %s337
          %s339 = sand.u32 %s91, 1
          %s340 = smul.addr %s339, 8
          %s341 = scalar_lea.vmem [#allocation5], %s340
          %342 = dma.done %s338, 128
        $region44: #{tpu_custom_call.1} parent=39 // pred_fallthru
          _
      $region40: #{tpu_custom_call.1} parent=5 // pred_fallthru
        _
    $region6: #{tpu_custom_call.1} parent=1 // loop_footer
      %s18 = sadd.s32 1, %s14
    $region7: #{tpu_custom_call.1} parent=1 // loop_footer_branch
      %13 = sbr.rel target = $region3
    $region8: #{tpu_custom_call.1} parent=1 // loop_exit
      _
    %343 = vsyncpa [#allocation3], 1
    %s344 = scalar_lea.sflag [#allocation3], 1
    %345 = vsyncpa %s344, 1
    %346 = vsyncpa [#allocation4], 1
    %s347 = scalar_lea.sflag [#allocation4], 1
    %348 = vsyncpa %s347, 1

</llo_original>
